<compile_context>
chip_gen: v7x
topology: tpu7x:2x2x1
jax: 0.10.0
libtpu: 0.0.40
codegen_flags: <defaults>
</compile_context>

<pallas_src>
import jax
import jax.numpy as jnp
import numpy as np
from jax.experimental import pallas as pl
from jax.experimental.pallas import tpu as pltpu

# Fixed (requires_grad=False) grayscale coefficients from GradLayer.get_gray, as Python
# scalars so nothing is closure-captured as an array constant inside the kernel.
C0 = 65.738 / 256.0
C1 = 129.057 / 256.0
C2 = 25.064 / 256.0


def _grad_kernel(x_ref, o_ref):
    """x_ref: (NB, C, H, W) unpadded images.  o_ref: (NB, H, W) gradient magnitude."""
    NB, C, H, W = x_ref.shape

    # Border masks for the padding=1 zero border — hoisted out of the per-image loop.
    row = jax.lax.broadcasted_iota(jnp.int32, (H, W), 0)
    col = jax.lax.broadcasted_iota(jnp.int32, (H, W), 1)
    has_up, has_dn = row > 0, row < H - 1
    has_lt, has_rt = col > 0, col < W - 1

    # Unrolled at trace time; NB is kept small (<= 8) by the wrapper.
    for i in range(NB):
        # Grayscale as explicit scalar FMAs on channel slabs (no (1,3,1,1) broadcast
        # temp), computed in f32 regardless of input dtype.
        if C == 3:
            g = (C0 * x_ref[i, 0].astype(jnp.float32)
                 + C1 * x_ref[i, 1].astype(jnp.float32)
                 + C2 * x_ref[i, 2].astype(jnp.float32))
        else:
            g = x_ref[i, 0].astype(jnp.float32)

        # Neighbours via XLU rolls (free-ish slot); out-of-image positions re-zeroed
        # with the precomputed masks.  (roll by n-1 == roll by -1, avoids negative
        # shifts.)  This keeps the conv's zero padding entirely in-register — no HBM
        # pad round-trip.
        g_dn = jnp.where(has_dn, pltpu.roll(g, shift=H - 1, axis=0), 0.0)  # g[i+1, j]
        g_up = jnp.where(has_up, pltpu.roll(g, shift=1,     axis=0), 0.0)  # g[i-1, j]
        g_rt = jnp.where(has_rt, pltpu.roll(g, shift=W - 1, axis=1), 0.0)  # g[i, j+1]
        g_lt = jnp.where(has_lt, pltpu.roll(g, shift=1,     axis=1), 0.0)  # g[i, j-1]

        x_v = g_dn - g_up   # conv2d with [[0,-1,0],[0,0,0],[0,1,0]], padding=1
        x_h = g_rt - g_lt   # conv2d with [[0,0,0],[-1,0,1],[0,0,0]], padding=1

        o_ref[i] = jnp.sqrt(x_v * x_v + x_h * x_h + 1e-6).astype(o_ref.dtype)


def grad_layer(x, *, images_per_step=None):
    """x: (N, C, H, W) with C in {1, 3}.  Returns (N, 1, H, W)."""
    N, C, H, W = x.shape
    if C not in (1, 3):
        raise ValueError("GradLayer expects 1- or 3-channel NCHW input")

    itemsize = x.dtype.itemsize
    f32 = 4

    def per_step_bytes(nb):
        in_blk = nb * C * H * W * itemsize          # input block
        out_blk = nb * H * W * itemsize             # output block
        temps = 12 * nb * H * W * f32               # g, 4 neighbours, diffs, masks, result
        return 2 * (in_blk + out_blk) + temps       # double-buffered I/O + live temps

    if images_per_step is None:
        # Largest divisor of N that fits the VMEM budget, keeps the grid >= 2 steps for
        # v7x megacore (when N >= 2), and bounds the trace-time unroll.
        budget = 24 * 1024 * 1024
        nb = 1
        for cand in range(1, min(N, 8) + 1):
            if N % cand:
                continue
            if per_step_bytes(cand) > budget:
                break
            if N >= 2 and N // cand < 2:
                continue
            nb = cand
    else:
        nb = images_per_step
        assert N % nb == 0, "images_per_step must divide N"

    grid = (N // nb,)
    vmem_limit = int(min(max(2 * per_step_bytes(nb), 32 * 1024 * 1024),
                         64 * 1024 * 1024))

    cost = pl.CostEstimate(
        flops=11 * N * H * W,
        transcendentals=N * H * W,                               # one sqrt per pixel
        bytes_accessed=N * (C + 1) * H * W * itemsize,           # read x, write out
    )

    # TODO(synk): for very large images (e.g. 1080p+) tile H with a 1-row halo (extra
    # 1-row halo BlockSpecs or manual DMA) so the per-step block stays within VMEM; one
    # whole image per grid step is fine for the small shapes exercised here.
    return pl.pallas_call(
        _grad_kernel,
        out_shape=jax.ShapeDtypeStruct((N, 1, H, W), x.dtype),
        grid=grid,
        in_specs=[pl.BlockSpec((nb, C, H, W), lambda n: (n, 0, 0, 0))],
        out_specs=pl.BlockSpec((nb, pl.Squeezed(), H, W), lambda n: (n, 0, 0, 0)),
        compiler_params=pltpu.CompilerParams(
            dimension_semantics=("parallel",),
            vmem_limit_bytes=vmem_limit,
        ),
        cost_estimate=cost,
    )(x)


def _reference(x):
    """Pure-JAX reference implementing the same semantics (correctness check)."""
    N, C, H, W = x.shape
    if C == 3:
        coeffs = jnp.array([C0, C1, C2], x.dtype).reshape(1, 3, 1, 1)
        g = jnp.sum(x * coeffs, axis=1, keepdims=True)
    else:
        g = x
    gp = jnp.pad(g, ((0, 0), (0, 0), (1, 1), (1, 1)))
    x_v = gp[:, :, 2:, 1:-1] - gp[:, :, :-2, 1:-1]
    x_h = gp[:, :, 1:-1, 2:] - gp[:, :, 1:-1, :-2]
    return jnp.sqrt(x_v ** 2 + x_h ** 2 + 1e-6)


if __name__ == "__main__":
    key = jax.random.PRNGKey(0)
    k1, k2, k3 = jax.random.split(key, 3)
    x3 = jax.random.uniform(k1, (2, 3, 16, 16), dtype=jnp.float32)   # RGB path
    x1 = jax.random.uniform(k2, (2, 1, 16, 16), dtype=jnp.float32)   # 1-channel path
    x4 = jax.random.uniform(k3, (4, 3, 16, 16), dtype=jnp.float32)   # multi-image block path

    out3 = jax.block_until_ready(grad_layer(x3))
    out1 = jax.block_until_ready(grad_layer(x1))
    out4 = jax.block_until_ready(grad_layer(x4))

    assert out3.shape == (2, 1, 16, 16), out3.shape
    assert out1.shape == (2, 1, 16, 16), out1.shape
    assert out4.shape == (4, 1, 16, 16), out4.shape
    np.testing.assert_allclose(np.asarray(out3), np.asarray(_reference(x3)),
                               rtol=1e-5, atol=1e-5)
    np.testing.assert_allclose(np.asarray(out1), np.asarray(_reference(x1)),
                               rtol=1e-5, atol=1e-5)
    np.testing.assert_allclose(np.asarray(out4), np.asarray(_reference(x4)),
                               rtol=1e-5, atol=1e-5)
    print("KERNEL_OK")
</pallas_src>

<mosaic_0001>
module attributes {stable_mosaic.version = 11 : i64} {
  func.func @_grad_kernel(%arg0: i32, %arg1: memref<1x3x16x16xf32, #tpu.memory_space<vmem>>, %arg2: memref<1x1x16x16xf32, #tpu.memory_space<vmem>>) attributes {dimension_semantics = [#tpu.dimension_semantics<parallel>], iteration_bounds = array<i64: 2>, scalar_prefetch = 0 : i64, scratch_operands = 0 : i64, tpu.core_type = #tpu.core_type<tc>, window_params = [{transform_indices = @transform_0, window_bounds = array<i64: 1, 3, 16, 16>}, {transform_indices = @transform_1, window_bounds = array<i64: 1, 1, 16, 16>}]} {
    %0 = tpu.iota {dimensions = array<i32: 0>} : vector<16x16xi32>
    %1 = tpu.iota {dimensions = array<i32: 1>} : vector<16x16xi32>
    %c0_i32 = arith.constant 0 : i32
    %2 = vector.broadcast %c0_i32 : i32 to vector<16x16xi32>
    %3 = arith.cmpi sgt, %0, %2 : vector<16x16xi32>
    %c15_i32 = arith.constant 15 : i32
    %4 = vector.broadcast %c15_i32 : i32 to vector<16x16xi32>
    %5 = arith.cmpi slt, %0, %4 : vector<16x16xi32>
    %c0_i32_0 = arith.constant 0 : i32
    %6 = vector.broadcast %c0_i32_0 : i32 to vector<16x16xi32>
    %7 = arith.cmpi sgt, %1, %6 : vector<16x16xi32>
    %c15_i32_1 = arith.constant 15 : i32
    %8 = vector.broadcast %c15_i32_1 : i32 to vector<16x16xi32>
    %9 = arith.cmpi slt, %1, %8 : vector<16x16xi32>
    %c0 = arith.constant 0 : index
    %c0_2 = arith.constant 0 : index
    %c0_3 = arith.constant 0 : index
    %c0_4 = arith.constant 0 : index
    %10 = vector.load %arg1[%c0, %c0_2, %c0_3, %c0_4] : memref<1x3x16x16xf32, #tpu.memory_space<vmem>>, vector<1x1x16x16xf32>
    %11 = vector.shape_cast %10 : vector<1x1x16x16xf32> to vector<16x16xf32>
    %cst = arith.constant 0.256789058 : f32
    %12 = vector.broadcast %cst : f32 to vector<16x16xf32>
    %13 = arith.mulf %12, %11 : vector<16x16xf32>
    %c0_5 = arith.constant 0 : index
    %c1 = arith.constant 1 : index
    %c0_6 = arith.constant 0 : index
    %c0_7 = arith.constant 0 : index
    %14 = vector.load %arg1[%c0_5, %c1, %c0_6, %c0_7] : memref<1x3x16x16xf32, #tpu.memory_space<vmem>>, vector<1x1x16x16xf32>
    %15 = vector.shape_cast %14 : vector<1x1x16x16xf32> to vector<16x16xf32>
    %cst_8 = arith.constant 0.504128933 : f32
    %16 = vector.broadcast %cst_8 : f32 to vector<16x16xf32>
    %17 = arith.mulf %16, %15 : vector<16x16xf32>
    %18 = arith.addf %13, %17 : vector<16x16xf32>
    %c0_9 = arith.constant 0 : index
    %c2 = arith.constant 2 : index
    %c0_10 = arith.constant 0 : index
    %c0_11 = arith.constant 0 : index
    %19 = vector.load %arg1[%c0_9, %c2, %c0_10, %c0_11] : memref<1x3x16x16xf32, #tpu.memory_space<vmem>>, vector<1x1x16x16xf32>
    %20 = vector.shape_cast %19 : vector<1x1x16x16xf32> to vector<16x16xf32>
    %cst_12 = arith.constant 0.0979062467 : f32
    %21 = vector.broadcast %cst_12 : f32 to vector<16x16xf32>
    %22 = arith.mulf %21, %20 : vector<16x16xf32>
    %23 = arith.addf %18, %22 : vector<16x16xf32>
    %c15_i32_13 = arith.constant 15 : i32
    %24 = tpu.dynamic_rotate %23 by %c15_i32_13 dim 0 : vector<16x16xf32>, i32 -> vector<16x16xf32>
    %cst_14 = arith.constant 0.000000e+00 : f32
    %25 = vector.broadcast %cst_14 : f32 to vector<16x16xf32>
    %26 = arith.select %5, %24, %25 : vector<16x16xi1>, vector<16x16xf32>
    %c1_i32 = arith.constant 1 : i32
    %27 = tpu.dynamic_rotate %23 by %c1_i32 dim 0 : vector<16x16xf32>, i32 -> vector<16x16xf32>
    %cst_15 = arith.constant 0.000000e+00 : f32
    %28 = vector.broadcast %cst_15 : f32 to vector<16x16xf32>
    %29 = arith.select %3, %27, %28 : vector<16x16xi1>, vector<16x16xf32>
    %c15_i32_16 = arith.constant 15 : i32
    %30 = tpu.dynamic_rotate %23 by %c15_i32_16 dim 1 : vector<16x16xf32>, i32 -> vector<16x16xf32>
    %cst_17 = arith.constant 0.000000e+00 : f32
    %31 = vector.broadcast %cst_17 : f32 to vector<16x16xf32>
    %32 = arith.select %9, %30, %31 : vector<16x16xi1>, vector<16x16xf32>
    %c1_i32_18 = arith.constant 1 : i32
    %33 = tpu.dynamic_rotate %23 by %c1_i32_18 dim 1 : vector<16x16xf32>, i32 -> vector<16x16xf32>
    %cst_19 = arith.constant 0.000000e+00 : f32
    %34 = vector.broadcast %cst_19 : f32 to vector<16x16xf32>
    %35 = arith.select %7, %33, %34 : vector<16x16xi1>, vector<16x16xf32>
    %36 = arith.subf %26, %29 : vector<16x16xf32>
    %37 = arith.subf %32, %35 : vector<16x16xf32>
    %38 = arith.mulf %36, %36 : vector<16x16xf32>
    %39 = arith.mulf %37, %37 : vector<16x16xf32>
    %40 = arith.addf %38, %39 : vector<16x16xf32>
    %cst_20 = arith.constant 9.99999997E-7 : f32
    %41 = vector.broadcast %cst_20 : f32 to vector<16x16xf32>
    %42 = arith.addf %40, %41 : vector<16x16xf32>
    %43 = math.sqrt %42 : vector<16x16xf32>
    %c0_21 = arith.constant 0 : index
    %c0_22 = arith.constant 0 : index
    %c0_23 = arith.constant 0 : index
    %c0_24 = arith.constant 0 : index
    %44 = vector.load %arg2[%c0_21, %c0_22, %c0_23, %c0_24] : memref<1x1x16x16xf32, #tpu.memory_space<vmem>>, vector<1x1x16x16xf32>
    %45 = vector.shape_cast %44 : vector<1x1x16x16xf32> to vector<16x16xf32>
    %46 = vector.shape_cast %43 : vector<16x16xf32> to vector<1x1x16x16xf32>
    tpu.vector_store %arg2[%c0_21, %c0_22, %c0_23, %c0_24], %46 {strides = array<i32>} : memref<1x1x16x16xf32, #tpu.memory_space<vmem>>, vector<1x1x16x16xf32>,
    return
  }
  func.func @transform_0(%arg0: i32) -> (i32, i32, i32, i32) {
    %c0_i32 = arith.constant 0 : i32
    %c0_i32_0 = arith.constant 0 : i32
    %c0_i32_1 = arith.constant 0 : i32
    %c0_i32_2 = arith.constant 0 : i32
    return %arg0, %c0_i32, %c0_i32_0, %c0_i32_1 : i32, i32, i32, i32
  }
  func.func @transform_1(%arg0: i32) -> (i32, i32, i32, i32) {
    %c0_i32 = arith.constant 0 : i32
    %c0_i32_0 = arith.constant 0 : i32
    %c0_i32_1 = arith.constant 0 : i32
    %c0_i32_2 = arith.constant 0 : i32
    return %arg0, %c0_i32, %c0_i32_0, %c0_i32_1 : i32, i32, i32, i32
  }
}

</mosaic_0001>

<llo_original>
// kernel: tpu_custom_call.1
$region0: #{tpu_custom_call.1}
  #allocation0 [shape = 'u32[]', space=smem, size = 0x4, offset = 0x4, fixed_abs, tag = 'smem constant byte address 0x4 - core index']
  #allocation1 [shape = 'u32[144,128]{1,0:T(1,128)}', space=vmem, size = 0x12000, scoped, tag = 'internal scratch']
  %s0 = inlined_call_operand.hbm [shape: f32[2,3,16,16], index: 0, kind: input, shape index: {}]
  %s1 = inlined_call_operand.hbm [shape: f32[2,1,16,16], index: 1, kind: output, shape index: {}]
  %s2 = sld [smem:[#allocation0]]
  $region41: #{tpu_custom_call.1} parent=0
    _
  %s4 = ssub.s32 1, %s2
  %s5 = scalar_select 0, %s4, %s2
  $region1: #{tpu_custom_call.1} parent=0
    #allocation2 [shape = 'u8[49152]{0}', space=vmem, size = 0xc000, scoped, tag = 'input window, operand 0']
    #allocation3 [shape = 's32[2]{0}', space=sflag, size = 0x8, scoped, tag = 'scoped memory for tpu_custom_call.1']
    #allocation4 [shape = 's32[2]{0}', space=sflag, size = 0x8, scoped, tag = 'scoped memory for tpu_custom_call.1']
    #allocation5 [shape = 'u8[16384]{0}', space=vmem, size = 0x4000, scoped, tag = 'output window, operand 0']
    %6 = vsyncpa [#allocation3], 0
    %s7 = scalar_lea.sflag [#allocation3], 1
    %8 = vsyncpa %s7, 0
    %9 = vsyncpa [#allocation4], 0
    %s10 = scalar_lea.sflag [#allocation4], 1
    %11 = vsyncpa %s10, 0
    loop: start=0, step=1, limit=4
    $region2: #{tpu_custom_call.1} parent=1 // loop_pre_header
      _
    $region3: #{tpu_custom_call.1} parent=1 // loop_header
      %s13 = sphi 0, %s17
      %p14 = scmp.ge.s32.totalorder %s13, 4
      %s23 = sphi 0, %s25
      %s26 = sphi 0, %s23
      %s27 = sphi 0, %s26
      %s43 = sphi 0, %s27
      %s49 = sphi 0, %s51
      %s52 = sphi 0, %s49
      %s53 = sphi 0, %s52
      %s69 = sphi 0, %s53
    $region4: #{tpu_custom_call.1} parent=1 // loop_header_branch
      %16 = sbr.rel (%p14) target = $region8
    $region5: #{tpu_custom_call.1} parent=1 // loop_body
      %s18 = ssub.s32 %s13, 1
      %s19 = ssub.s32 %s13, 2
      %s20 = sadd.s32 %s13, 1
      %s21 = ssub.s32 %s13, %s20
      %p22 = scmp.eq.s32.totalorder %s21, 0
      %s24 = sadd.s32 %s23, 1
      %s25 = scalar_select %p22, %s23, %s24
      %p28 = pneg %p22
      %p29 = scmp.eq.s32.totalorder %s13, 1
      %p30 = por %p28, %p29
      %p31 = scmp.ne.s32.totalorder %s23, %s26
      %p32 = scmp.eq.s32.totalorder %s13, 0
      %p33 = por %p31, %p32
      %p34 = scmp.ne.s32.totalorder %s23, %s26
      %p35 = scmp.eq.s32.totalorder %s18, 1
      %p36 = por %p34, %p35
      %p37 = scmp.ne.s32.totalorder %s26, %s27
      %p38 = scmp.eq.s32.totalorder %s18, 0
      %p39 = por %p37, %p38
      %p40 = scmp.ne.s32.totalorder %s26, %s27
      %p41 = scmp.eq.s32.totalorder %s19, 1
      %p42 = por %p40, %p41
      %p44 = scmp.ne.s32.totalorder %s27, %s43
      %p45 = scmp.eq.s32.totalorder %s19, 0
      %p46 = por %p44, %p45
      %s47 = ssub.s32 %s13, %s20
      %p48 = scmp.eq.s32.totalorder %s47, 0
      %s50 = sadd.s32 %s49, 1
      %s51 = scalar_select %p48, %s49, %s50
      %p54 = pneg %p48
      %p55 = scmp.eq.s32.totalorder %s13, 1
      %p56 = por %p54, %p55
      %p57 = scmp.ne.s32.totalorder %s49, %s52
      %p58 = scmp.eq.s32.totalorder %s13, 0
      %p59 = por %p57, %p58
      %p60 = scmp.ne.s32.totalorder %s49, %s52
      %p61 = scmp.eq.s32.totalorder %s18, 1
      %p62 = por %p60, %p61
      %p63 = scmp.ne.s32.totalorder %s52, %s53
      %p64 = scmp.eq.s32.totalorder %s18, 0
      %p65 = por %p63, %p64
      %p66 = scmp.ne.s32.totalorder %s52, %s53
      %p67 = scmp.eq.s32.totalorder %s19, 1
      %p68 = por %p66, %p67
      %p70 = scmp.ne.s32.totalorder %s53, %s69
      %p71 = scmp.eq.s32.totalorder %s19, 0
      %p72 = por %p70, %p71
      %p73 = scmp.le.s32.totalorder 1, %s13
      %p74 = scmp.lt.s32.totalorder %s13, 3
      %p75 = pnand %p73, %p74
      %p76 = pneg %p75
      // Predicated region
      $region9: #{tpu_custom_call.1} parent=5 // pred_check
        _
      $region10: #{tpu_custom_call.1} parent=5 // pred_check_branch
        %78 = sbr.rel (%p75) target = $region12
      $region11: #{tpu_custom_call.1} parent=5 // pred_region
        %s79 = ssub.s32 %s13, 1
      $region12: #{tpu_custom_call.1} parent=5 // pred_fallthru
        _
      %p80 = scmp.lt.s32.totalorder %s13, 2
      // Predicated region
      $region13: #{tpu_custom_call.1} parent=5 // pred_check
        %p81 = pneg %p80
      $region14: #{tpu_custom_call.1} parent=5 // pred_check_branch
        %83 = sbr.rel (%p81) target = $region16
      $region15: #{tpu_custom_call.1} parent=5 // pred_region
        // Predicated region
        $region17: #{tpu_custom_call.1} parent=15 // pred_check
          %p84 = pneg %p33
        $region18: #{tpu_custom_call.1} parent=15 // pred_check_branch
          %86 = sbr.rel (%p84) target = $region20
        $region19: #{tpu_custom_call.1} parent=15 // pred_region
          %s87 = sand.u32 %s23, 1
          %s88 = scalar_lea.sflag [#allocation3], %s87
          %s89 = sand.u32 %s23, 1
          %s90 = smul.addr %s89, 48
          %s91 = scalar_lea.vmem [#allocation2], %s90
          %s93 = ssub.s32 768, 768
          %94 = vsyncadd %s88, %s93
          %s95 = smul.addr %s13, 6
          %s96 = smul.addr %s95, 128
          %s97 = scalar_lea.hbm %s0, %s96
          %s98 = sshll.u32 %s91, 4
          %s99 = int_to_ptr.vmem [resolvable:$true] %s98
          %104 = dma.hbm_to_vmem [thread:$0]  %s97, 768, %s99, %s88, 128, 128, 8
        $region20: #{tpu_custom_call.1} parent=15 // pred_fallthru
          _
      $region16: #{tpu_custom_call.1} parent=5 // pred_fallthru
        _
      %p105 = scmp.le.s32.totalorder 1, %s13
      %p106 = scmp.lt.s32.totalorder %s13, 3
      %p107 = pnand %p105, %p106
      %p108 = pneg %p107
      // Predicated region
      $region21: #{tpu_custom_call.1} parent=5 // pred_check
        _
      $region22: #{tpu_custom_call.1} parent=5 // pred_check_branch
        %110 = sbr.rel (%p107) target = $region24
      $region23: #{tpu_custom_call.1} parent=5 // pred_region
        %s111 = ssub.s32 %s13, 1
        %s112 = sand.u32 %s26, 1
        %s113 = scalar_lea.sflag [#allocation3], %s112
        %s114 = sand.u32 %s26, 1
        %s115 = smul.addr %s114, 48
        %s116 = scalar_lea.vmem [#allocation2], %s115
        // Predicated region
        $region25: #{tpu_custom_call.1} parent=23 // pred_check
          %p117 = pneg %p39
        $region26: #{tpu_custom_call.1} parent=23 // pred_check_branch
          %119 = sbr.rel (%p117) target = $region28
        $region27: #{tpu_custom_call.1} parent=23 // pred_region
          %120 = dma.done %s113, 768
        $region28: #{tpu_custom_call.1} parent=23 // pred_fallthru
          _
        %s121 = sand.u32 %s26, 1
        %s122 = scalar_lea.sflag [#allocation3], %s121
        %s123 = sand.u32 %s26, 1
        %s124 = smul.addr %s123, 48
        %s125 = scalar_lea.vmem [#allocation2], %s124
        %p126 = pneg %p39
        %p127 = pneg %p36
        %p128 = pneg %p65
        %p129 = pneg %p62
        %s130 = sand.u32 %s52, 1
        %s131 = scalar_lea.sflag [#allocation4], %s130
        %s132 = sand.u32 %s52, 1
        %s133 = smul.addr %s132, 16
        %s134 = scalar_lea.vmem [#allocation5], %s133
        %v135 = vlaneseq
        %v136 = vshrl.u32 %v135, 7
        %v137 = vadd.s32 %v136, 8
        %v138 = vlaneseq
        %v139 = vand.u32 %v138, 127
        %vm140 = vcmp.gt.s32.totalorder %v136, 0
        %vm141 = vcmp.gt.s32.totalorder %v137, 0
        %vm142 = vcmp.lt.s32.totalorder %v136, 15
        %vm143 = vcmp.lt.s32.totalorder %v137, 15
        %vm144 = vcmp.gt.s32.totalorder %v139, 0
        %vm145 = vcmp.lt.s32.totalorder %v139, 15
        %v146 = vld [vmem:[%s116] sm:$0xff]
        %v147 = vld [vmem:[%s116 + $0x8] sm:$0xff]
        %v148 = vmul.f32 %v146, 0.25678906
        %v149 = vmul.f32 %v147, 0.25678906
        %s150 = scalar_lea.vmem %s116, 16 [#allocation2]
        %v151 = vld [vmem:[%s150] sm:$0xff]
        %v152 = vld [vmem:[%s150 + $0x8] sm:$0xff]
        %v153 = vmul.f32 %v151, 0.50412893
        %v154 = vmul.f32 %v152, 0.50412893
        %v155 = vadd.f32 %v148, %v153
        %v156 = vadd.f32 %v149, %v154
        %s157 = scalar_lea.vmem %s116, 32 [#allocation2]
        %v158 = vld [vmem:[%s157] sm:$0xff]
        %v159 = vld [vmem:[%s157 + $0x8] sm:$0xff]
        %v160 = vmul.f32 %v158, 0.09790625
        %v161 = vmul.f32 %v159, 0.09790625
        %v162 = vadd.f32 %v155, %v160
        %v163 = vadd.f32 %v156, %v161
        %v164 = vrot.slane %v162, 1
        %v165 = vrot.slane %v163, 1
        %vm166 = vcmp.lt.s32.totalorder %v136, 7
        %v167 = vsel %vm166, %v164, %v165
        %v168 = vsel %vm166, %v165, %v164
        %v169 = vsel %vm142, %v167, 0.0
        %v170 = vsel %vm143, %v168, 0.0
        %v171 = vrot.slane %v162, 7
        %v172 = vrot.slane %v163, 7
        %vm173 = vcmp.lt.s32.totalorder %v136, 1
        %v174 = vsel %vm173, %v171, %v172
        %v175 = vsel %vm173, %v172, %v171
        %v176 = vsel %vm140, %v175, 0.0
        %v177 = vsel %vm141, %v174, 0.0
        %vm178 = vcmask 1047680
        %179 = vrot.lane.b32.xlu0 %v162, 16
        %v180 = vpop.permute.xlu0 %179
        %v181 = vsel %vm178, %v180, %v162
        %182 = vrot.lane.b32.xlu0 %v163, 16
        %v183 = vpop.permute.xlu0 %182
        %v184 = vsel %vm178, %v183, %v163
        %185 = vrot.lane.b32.xlu0 %v181, 16
        %v186 = vpop.permute.xlu0 %185
        %187 = vrot.lane.b32.xlu0 %v184, 16
        %v188 = vpop.permute.xlu0 %187
        %v189 = vsel %vm178, %v186, %v162
        %v190 = vsel %vm178, %v188, %v163
        %193 = vrot.lane.b32.xlu0 %v189, 127
        %v194 = vpop.permute.xlu0 %193
        %195 = vrot.lane.b32.xlu0 %v190, 127
        %v196 = vpop.permute.xlu0 %195
        %v199 = vsel %vm145, %v194, 0.0
        %v200 = vsel %vm145, %v196, 0.0
        %201 = vrot.lane.b32.xlu0 %v189, 113
        %v202 = vpop.permute.xlu0 %201
        %203 = vrot.lane.b32.xlu0 %v190, 113
        %v204 = vpop.permute.xlu0 %203
        %v207 = vsel %vm144, %v202, 0.0
        %v208 = vsel %vm144, %v204, 0.0
        %v209 = vsub.f32 %v169, %v176
        %v210 = vsub.f32 %v170, %v177
        %v211 = vsub.f32 %v199, %v207
        %v212 = vsub.f32 %v200, %v208
        %v213 = vmul.f32 %v209, %v209
        %v214 = vmul.f32 %v210, %v210
        %v215 = vmul.f32 %v211, %v211
        %v216 = vmul.f32 %v212, %v212
        %v217 = vadd.f32 %v213, %v215
        %v218 = vadd.f32 %v214, %v216
        %v219 = vadd.f32 %v217, 1e-06
        %v220 = vadd.f32 %v218, 1e-06
        %v221 = vrsqrt.pop %v219
        %v222 = vmul.f32 %v219, %v221
        %vm223 = vcmp.eq.f32.partialorder %v219, inf
        %v224 = vsel %vm223, %v219, %v222
        %vm225 = vcmp.eq.f32.partialorder %v219, 0.0
        %v226 = vand.u32 %v219, 2147483648
        %v227 = vsel %vm225, %v226, %v224
        %v228 = vrsqrt.pop %v220
        %v229 = vmul.f32 %v220, %v228
        %vm230 = vcmp.eq.f32.partialorder %v220, inf
        %v231 = vsel %vm230, %v220, %v229
        %vm232 = vcmp.eq.f32.partialorder %v220, 0.0
        %v233 = vand.u32 %v220, 2147483648
        %v234 = vsel %vm232, %v233, %v231
        %vm235 = vcmask 130048
        %236 = vst.msk [vmem:[%s134] sm:$0xff] %vm235, %v227
        %237 = vst.msk [vmem:[%s134 + $0x8] sm:$0xff] %vm235, %v234
        %s238 = sand.u32 %s52, 1
        %s239 = scalar_lea.sflag [#allocation4], %s238
        %s240 = sand.u32 %s52, 1
        %s241 = smul.addr %s240, 16
        %s242 = scalar_lea.vmem [#allocation5], %s241
        // Predicated region
        $region29: #{tpu_custom_call.1} parent=23 // pred_check
          %p243 = pneg %p62
        $region30: #{tpu_custom_call.1} parent=23 // pred_check_branch
          %245 = sbr.rel (%p243) target = $region32
        $region31: #{tpu_custom_call.1} parent=23 // pred_region
          %s247 = ssub.s32 256, 256
          %248 = vsyncadd %s239, %s247
          %s249 = smul.addr %s18, 2
          %s250 = smul.addr %s249, 128
          %s251 = scalar_lea.hbm %s1, %s250
          %s252 = sshll.u32 %s242, 4
          %s253 = int_to_ptr.vmem [resolvable:$true] %s252
          %258 = dma.vmem_to_hbm [thread:$0]  %s253, 256, %s251, %s239, 128, 128, 8
        $region32: #{tpu_custom_call.1} parent=23 // pred_fallthru
          _
      $region24: #{tpu_custom_call.1} parent=5 // pred_fallthru
        _
      %p259 = scmp.le.s32.totalorder 2, %s13
      // Predicated region
      $region33: #{tpu_custom_call.1} parent=5 // pred_check
        %p260 = pneg %p259
      $region34: #{tpu_custom_call.1} parent=5 // pred_check_branch
        %262 = sbr.rel (%p260) target = $region36
      $region35: #{tpu_custom_call.1} parent=5 // pred_region
        %s263 = ssub.s32 %s13, 2
        // Predicated region
        $region37: #{tpu_custom_call.1} parent=35 // pred_check
          %p264 = pneg %p68
        $region38: #{tpu_custom_call.1} parent=35 // pred_check_branch
          %266 = sbr.rel (%p264) target = $region40
        $region39: #{tpu_custom_call.1} parent=35 // pred_region
          %s267 = sand.u32 %s53, 1
          %s268 = scalar_lea.sflag [#allocation4], %s267
          %s269 = sand.u32 %s53, 1
          %s270 = smul.addr %s269, 16
          %s271 = scalar_lea.vmem [#allocation5], %s270
          %272 = dma.done %s268, 256
        $region40: #{tpu_custom_call.1} parent=35 // pred_fallthru
          _
      $region36: #{tpu_custom_call.1} parent=5 // pred_fallthru
        _
    $region6: #{tpu_custom_call.1} parent=1 // loop_footer
      %s17 = sadd.s32 1, %s13
    $region7: #{tpu_custom_call.1} parent=1 // loop_footer_branch
      %12 = sbr.rel target = $region3
    $region8: #{tpu_custom_call.1} parent=1 // loop_exit
      _
    %273 = vsyncpa [#allocation3], 1
    %s274 = scalar_lea.sflag [#allocation3], 1
    %275 = vsyncpa %s274, 1
    %276 = vsyncpa [#allocation4], 1
    %s277 = scalar_lea.sflag [#allocation4], 1
    %278 = vsyncpa %s277, 1

</llo_original>
